<compile_context>
chip_gen: v6e
topology: v6e:2x2x1
jax: 0.10.0
libtpu: 0.0.40
codegen_flags: <defaults>
</compile_context>

<pallas_src>
import functools

import jax
import jax.numpy as jnp
from jax.experimental import pallas as pl
from jax.experimental.pallas import tpu as pltpu

EPS = 1e-8                 # matches the torch module's `eps`
MXU_DTYPE = jnp.bfloat16   # MXU input dtype (f32 accumulation)
NEG_BIG = -1e30            # "-inf" stand-in that keeps exp()/max() NaN-free


# --------------------------------------------------------------------------- #
# Kernel: fused (normalized-emb x pre-summed-proto) matmul + online logsumexp
# --------------------------------------------------------------------------- #
def _arcface_lse_kernel(emb_ref, proto_ref, m_out_ref, l_out_ref,
                        m_sc, l_lane, *, scale, num_classes, tiles_per_shard):
    """Grid = (batch tiles [parallel], class shards [parallel],
               class tiles per shard [arbitrary/reduction]).

    Emits per-(shard, sample) partial logsumexp statistics (running max,
    running sum of exp); the shard merge, the target-logit gather, the row-0
    margin patch and the mean are done in XLA.
    """
    si = pl.program_id(1)
    ni = pl.program_id(2)
    tb = emb_ref.shape[0]
    tn = proto_ref.shape[1]

    # ---- init accumulators on the first class tile of this (bi, si) ---------
    @pl.when(ni == 0)
    def _():
        m_sc[...] = jnp.full((tb, 1), NEG_BIG, jnp.float32)
        l_lane[...] = jnp.zeros((tb, 128), jnp.float32)

    # ---- (tb, E) bf16 x (E, tn) bf16 -> (tb, tn) f32 on the MXU --------------
    logits = jnp.dot(emb_ref[...], proto_ref[...],
                     preferred_element_type=jnp.float32) * scale

    # padded-class mask (padding is a contiguous tail of the class axis)
    col0 = (si * tiles_per_shard + ni) * tn
    col = col0 + jax.lax.broadcasted_iota(jnp.int32, (1, tn), 1)
    valid = col < num_classes                                       # (1, tn)

    # ---- online logsumexp update ---------------------------------------------
    m_prev = m_sc[...]                                              # (tb, 1)
    tile_max = jnp.max(jnp.where(valid, logits, NEG_BIG),
                       axis=-1, keepdims=True)                      # 1 XLU reduce
    m_new = jnp.maximum(m_prev, tile_max)
    alpha = jnp.exp(m_prev - m_new)
    p = jnp.where(valid, jnp.exp(logits - m_new), 0.0)              # (tb, tn)

    # fold 128-lane chunks with elementwise adds (VALU); the single cross-lane
    # sum is deferred to the finalize step.
    acc = p[:, 0:128]
    for c in range(1, tn // 128):                                   # static unroll
        acc = acc + p[:, c * 128:(c + 1) * 128]

    l_lane[...] = alpha * l_lane[...] + acc
    m_sc[...] = m_new

    # ---- finalize this shard's partials --------------------------------------
    @pl.when(ni == pl.num_programs(2) - 1)
    def _():
        m_out_ref[...] = m_sc[...].reshape(1, tb, 1)
        l_out_ref[...] = jnp.sum(l_lane[...], axis=-1,
                                 keepdims=True).reshape(1, tb, 1)


# --------------------------------------------------------------------------- #
# pallas_call wrapper
# --------------------------------------------------------------------------- #
def _arcface_lse_partials(emb_bf, proto_bf, *, scale, num_classes, block_n,
                          n_shards, tiles_per_shard, block_b=None):
    B, E = emb_bf.shape
    _, n_pad = proto_bf.shape
    tb = B if block_b is None else block_b            # keep tb = B (review item 4)
    assert B % tb == 0
    assert n_pad == n_shards * tiles_per_shard * block_n
    n_bt = B // tb
    grid = (n_bt, n_shards, tiles_per_shard)

    kernel = functools.partial(_arcface_lse_kernel, scale=float(scale),
                               num_classes=int(num_classes),
                               tiles_per_shard=int(tiles_per_shard))

    # CostEstimate: prototypes are re-streamed once per batch tile, embeddings
    # once per (batch tile, shard); one exp per logit plus the rescale exps.
    proto_bytes = n_pad * E * proto_bf.dtype.itemsize * n_bt
    emb_bytes = B * E * emb_bf.dtype.itemsize * n_shards
    out_bytes = 2 * n_shards * B * 4
    cost = pl.CostEstimate(
        flops=2 * B * E * n_pad + 8 * B * n_pad,
        transcendentals=B * n_pad + B * n_shards * tiles_per_shard,
        bytes_accessed=proto_bytes + emb_bytes + out_bytes)

    ts = int(tiles_per_shard)
    # VMEM/step ~ double-buffered (E*block_n*2 B) prototype tile + (tb,E) bf16
    # embeddings + small scratch -> comfortably inside the 32 MiB scoped default
    # on every generation (incl. v7x's 64 MiB physical budget).
    return pl.pallas_call(
        kernel,
        out_shape=(jax.ShapeDtypeStruct((n_shards, B, 1), jnp.float32),
                   jax.ShapeDtypeStruct((n_shards, B, 1), jnp.float32)),
        grid=grid,
        in_specs=[
            pl.BlockSpec((tb, E), lambda bi, si, ni: (bi, 0)),       # bf16 normalized emb
            # dominant HBM stream: single pre-summed (E, N) bf16 operand,
            # classes lane-dense.  (Add pipeline_mode=pl.Buffered(3) here if
            # profiling ever shows exposed DMA on this stream.)
            pl.BlockSpec((E, block_n),
                         lambda bi, si, ni: (0, si * ts + ni)),
        ],
        out_specs=[
            pl.BlockSpec((1, tb, 1), lambda bi, si, ni: (si, bi, 0)),  # running max
            pl.BlockSpec((1, tb, 1), lambda bi, si, ni: (si, bi, 0)),  # sumexp
        ],
        scratch_shapes=[pltpu.VMEM((tb, 1), jnp.float32),            # running max
                        pltpu.VMEM((tb, 128), jnp.float32)],          # lane-wide sumexp
        compiler_params=pltpu.CompilerParams(
            dimension_semantics=("parallel", "parallel", "arbitrary")),
        cost_estimate=cost,
    )(emb_bf, proto_bf)


# --------------------------------------------------------------------------- #
# Class-axis tiling geometry (all Python ints at trace time)
# --------------------------------------------------------------------------- #
def _class_tiling(num_classes, block_n, n_shards):
    n_lane = pl.cdiv(num_classes, 128) * 128          # minimal lane-padded width
    bn = max(128, min((block_n // 128) * 128, n_lane))
    n_tiles = pl.cdiv(n_lane, bn)
    ns = max(1, min(n_shards, n_tiles))               # never create all-padding shards
    tps = pl.cdiv(n_tiles, ns)
    n_pad = ns * tps * bn                             # padded tail is masked in-kernel
    return bn, ns, tps, n_pad


# --------------------------------------------------------------------------- #
# Jittable glue
# --------------------------------------------------------------------------- #
def linear_sequence_encode(labels):
    """First-appearance contiguous re-indexing (jittable LinearSequenceEncoder).

    # TODO(synk): the torch LinearSequenceEncoder is stateful across batches
    # (host-side dict); this stateless per-batch re-indexing matches a freshly
    # constructed encoder, which is what a single forward call sees.
    """
    labels = labels.reshape(-1)
    B = labels.shape[0]
    idx = jnp.arange(B, dtype=jnp.int32)
    eq = labels[:, None] == labels[None, :]
    first_idx = jnp.min(jnp.where(eq, idx[None, :], B), axis=1)
    is_first = (first_idx == idx).astype(jnp.int32)
    rank = jnp.cumsum(is_first) - 1
    return rank[first_idx].astype(jnp.int32)


@functools.partial(jax.jit,
                   static_argnames=("s", "additive_margin", "block_n", "n_shards"))
def _elastic_arcface_forward(embeddings, prototypes, labels, angle_m, *,
                             s, additive_margin, block_n, n_shards):
    B, E = embeddings.shape
    K, N, _ = prototypes.shape
    scale = s / K                                     # "*s then mean over k"

    labels_enc = linear_sequence_encode(labels)

    # ---- hoisted L2 normalization (torch.nn.functional.normalize, eps=1e-12) --
    emb = embeddings.astype(jnp.float32)
    en = emb / jnp.maximum(jnp.sqrt(jnp.sum(emb * emb, -1, keepdims=True)), 1e-12)
    pf = prototypes.astype(jnp.float32)
    pn = pf / jnp.maximum(jnp.sqrt(jnp.sum(pf * pf, -1, keepdims=True)), 1e-12)  # (K,N,E)

    # ---- pre-sum the K sub-center planes (margin-free logits are linear in k) -
    bn, ns, tps, n_pad = _class_tiling(N, block_n, n_shards)
    psum_t = jnp.transpose(jnp.sum(pn, axis=0), (1, 0))             # (E, N)
    psum_bf = jnp.pad(psum_t, ((0, 0), (0, n_pad - N))).astype(MXU_DTYPE)
    en_bf = en.astype(MXU_DTYPE)

    # ---- Pallas kernel: per-shard partial logsumexp ---------------------------
    m_p, l_p = _arcface_lse_partials(en_bf, psum_bf, scale=scale, num_classes=N,
                                     block_n=bn, n_shards=ns, tiles_per_shard=tps)
    m_p = m_p[..., 0]                                               # (ns, B)
    l_p = l_p[..., 0]
    m_all = jnp.max(m_p, axis=0)                                    # (B,)
    l_all = jnp.sum(l_p * jnp.exp(m_p - m_all[None, :]), axis=0)
    lse = m_all + jnp.log(l_all)                                    # (B,)

    # ---- target logits: tiny gather + per-sample dot (bf16-consistent) --------
    pcols = jnp.take(psum_bf.astype(jnp.float32), labels_enc, axis=1)      # (E, B)
    tgt = scale * jnp.sum(en_bf.astype(jnp.float32) * pcols.T, axis=-1)    # (B,)
    ce = lse - tgt                                   # CrossEntropyLoss(reduction='none')

    # ---- row-0 margin patch ---------------------------------------------------
    # torch's mask.scatter_(1, labels.view(1,-1,1), 1) sets mask[0, labels[j], 0]
    # = 1, i.e. the ArcFace margin is applied only on global batch row 0 /
    # sub-center 0, at every class id present in the batch.  Re-compute that
    # single row in f32 XLA (O(K*N*E)) and patch its loss.
    cos_m0 = jnp.cos(angle_m[0])
    sin_m0 = jnp.sin(angle_m[0])
    cos_t0 = jnp.einsum('e,kne->kn', en[0], pn)                     # (K, N)
    sine0 = jnp.clip(jnp.sqrt(jnp.maximum(1.0 - cos_t0 * cos_t0, EPS)),
                     EPS, 1.0 - EPS)
    phi0 = cos_m0 * cos_t0 - sin_m0 * sine0 - additive_margin
    in_batch = jnp.zeros((N,), jnp.float32).at[labels_enc].set(1.0)
    k0 = jnp.where(in_batch > 0.5, phi0[0], cos_t0[0])
    logits0 = (k0 + jnp.sum(cos_t0[1:], axis=0)) * scale            # (N,)
    m0 = jnp.max(logits0)
    lse0 = m0 + jnp.log(jnp.sum(jnp.exp(logits0 - m0)))
    ce0 = lse0 - logits0[labels_enc[0]]
    ce = ce.at[0].set(ce0)

    # use_class_weights=False in the reference -> class_freqs == 1 -> identity.
    return jnp.mean(ce)


# --------------------------------------------------------------------------- #
# Module
# --------------------------------------------------------------------------- #
class ElasticArcFaceLossPallas:
    """JAX/Pallas port of ElasticArcFaceLoss (purpose='train', no focal loss,
    no class weights, label_smoothing=0)."""

    def __init__(self, embedding_size, num_classes=182, s=64.0, angle_margin=0.5,
                 additive_margin=0.0, k_subcenters=2, margin_sigma=0.01,
                 block_n=512, n_class_shards=2, param_key=None):
        self.embedding_size = embedding_size
        self.num_classes = num_classes
        self.s = float(s)
        self.angle_margin = float(angle_margin)
        self.additive_margin = float(additive_margin)
        self.k_subcenters = k_subcenters
        self.margin_sigma = float(margin_sigma)
        self.block_n = block_n
        self.n_class_shards = n_class_shards
        self.is_eval = False
        if param_key is None:
            param_key = jax.random.PRNGKey(42)
        # xavier_uniform_ on a (K, N, E) tensor:
        #   fan_in = N * E, fan_out = K * E, bound = sqrt(6 / (fan_in + fan_out))
        bound = (6.0 / ((num_classes + k_subcenters) * embedding_size)) ** 0.5
        self.prototypes = jax.random.uniform(
            param_key, (k_subcenters, num_classes, embedding_size),
            dtype=jnp.float32, minval=-bound, maxval=bound)

    def __call__(self, embeddings, labels, noise_key=None):
        B = embeddings.shape[0]
        # elastic margin: angle_margin + randn * margin_sigma (per-sample)
        if (not self.is_eval) and noise_key is not None:
            noise = jax.random.normal(noise_key, (B,), jnp.float32)
        else:
            noise = jnp.zeros((B,), jnp.float32)
        angle_m = self.angle_margin + noise * self.margin_sigma

        loss = _elastic_arcface_forward(
            jnp.asarray(embeddings, jnp.float32), self.prototypes,
            jnp.asarray(labels, jnp.int32), angle_m,
            s=self.s, additive_margin=self.additive_margin,
            block_n=self.block_n, n_shards=self.n_class_shards)
        return loss, jnp.array([-1.0], jnp.float32), jnp.array([-1.0], jnp.float32)


if __name__ == "__main__":
    key = jax.random.PRNGKey(0)
    k_emb, k_lab, k_noise, k_param = jax.random.split(key, 4)

    B, E = 8, 32
    NUM_CLASSES, K_SUB = 182, 2

    embeddings = jax.random.normal(k_emb, (B, E), jnp.float32)
    labels = jax.random.randint(k_lab, (B,), 0, NUM_CLASSES, jnp.int32)

    module = ElasticArcFaceLossPallas(embedding_size=E, num_classes=NUM_CLASSES,
                                      k_subcenters=K_SUB, param_key=k_param)
    loss, pos_d, neg_d = module(embeddings, labels, k_noise)
    jax.block_until_ready(loss)
    assert bool(jnp.isfinite(loss)), "non-finite loss"

    # ---- structural self-check: kernel logsumexp vs plain XLA on identical
    #      bf16 operands (differences are only reduction order / exp rounding) --
    en = embeddings / jnp.maximum(
        jnp.sqrt(jnp.sum(embeddings * embeddings, -1, keepdims=True)), 1e-12)
    pf = module.prototypes
    pn = pf / jnp.maximum(jnp.sqrt(jnp.sum(pf * pf, -1, keepdims=True)), 1e-12)
    bn, ns, tps, n_pad = _class_tiling(NUM_CLASSES, module.block_n,
                                       module.n_class_shards)
    psum_bf = jnp.pad(jnp.transpose(jnp.sum(pn, 0), (1, 0)),
                      ((0, 0), (0, n_pad - NUM_CLASSES))).astype(MXU_DTYPE)
    en_bf = en.astype(MXU_DTYPE)
    scale = module.s / K_SUB
    m_p, l_p = _arcface_lse_partials(en_bf, psum_bf, scale=scale,
                                     num_classes=NUM_CLASSES, block_n=bn,
                                     n_shards=ns, tiles_per_shard=tps)
    m_p = m_p[..., 0]
    l_p = l_p[..., 0]
    m_all = jnp.max(m_p, axis=0)
    lse_kernel = m_all + jnp.log(jnp.sum(l_p * jnp.exp(m_p - m_all[None, :]), axis=0))
    logits_ref = scale * (en_bf.astype(jnp.float32)
                          @ psum_bf.astype(jnp.float32))[:, :NUM_CLASSES]
    mr = jnp.max(logits_ref, axis=-1)
    lse_ref = mr + jnp.log(jnp.sum(jnp.exp(logits_ref - mr[:, None]), axis=-1))
    jax.block_until_ready(lse_kernel)
    assert bool(jnp.allclose(lse_kernel, lse_ref, rtol=1e-3, atol=1e-3)), \
        "kernel logsumexp mismatch vs XLA reference"

    print("KERNEL_OK")
</pallas_src>

<mosaic_0001>
module attributes {stable_mosaic.version = 11 : i64} {
  func.func @_arcface_lse_kernel(%arg0: i32, %arg1: i32, %arg2: i32, %arg3: memref<8x32xbf16, #tpu.memory_space<vmem>>, %arg4: memref<32x256xbf16, #tpu.memory_space<vmem>>, %arg5: memref<1x8x1xf32, #tpu.memory_space<vmem>>, %arg6: memref<1x8x1xf32, #tpu.memory_space<vmem>>, %arg7: memref<8x1xf32, #tpu.memory_space<vmem>>, %arg8: memref<8x128xf32, #tpu.memory_space<vmem>>) attributes {dimension_semantics = [#tpu.dimension_semantics<parallel>, #tpu.dimension_semantics<parallel>, #tpu.dimension_semantics<arbitrary>], iteration_bounds = array<i64: 1, 1, 1>, scalar_prefetch = 0 : i64, scratch_operands = 2 : i64, tpu.core_type = #tpu.core_type<tc>, window_params = [{transform_indices = @transform_0, window_bounds = array<i64: 8, 32>}, {transform_indices = @transform_1, window_bounds = array<i64: 32, 256>}, {transform_indices = @transform_2, window_bounds = array<i64: 1, 8, 1>}, {transform_indices = @transform_3, window_bounds = array<i64: 1, 8, 1>}]} {
    %c0_i32 = arith.constant 0 : i32
    %0 = arith.cmpi eq, %arg2, %c0_i32 : i32
    %1 = arith.extui %0 : i1 to i32
    %c0_i32_0 = arith.constant 0 : i32
    %2 = arith.cmpi ne, %1, %c0_i32_0 : i32
    scf.if %2 {
      %cst_18 = arith.constant -1.000000e+30 : f32
      %45 = vector.broadcast %cst_18 : f32 to vector<8x1xf32>
      %c0_19 = arith.constant 0 : index
      %c0_20 = arith.constant 0 : index
      %46 = vector.load %arg7[%c0_19, %c0_20] : memref<8x1xf32, #tpu.memory_space<vmem>>, vector<8x1xf32>
      tpu.vector_store %arg7[%c0_19, %c0_20], %45 {strides = array<i32>} : memref<8x1xf32, #tpu.memory_space<vmem>>, vector<8x1xf32>,
      %cst_21 = arith.constant 0.000000e+00 : f32
      %47 = vector.broadcast %cst_21 : f32 to vector<8x128xf32>
      %c0_22 = arith.constant 0 : index
      %c0_23 = arith.constant 0 : index
      %48 = vector.load %arg8[%c0_22, %c0_23] : memref<8x128xf32, #tpu.memory_space<vmem>>, vector<8x128xf32>
      tpu.vector_store %arg8[%c0_22, %c0_23], %47 {strides = array<i32>} : memref<8x128xf32, #tpu.memory_space<vmem>>, vector<8x128xf32>,
    } else {
    }
    %c0 = arith.constant 0 : index
    %c0_1 = arith.constant 0 : index
    %3 = vector.load %arg3[%c0, %c0_1] : memref<8x32xbf16, #tpu.memory_space<vmem>>, vector<8x32xbf16>
    %c0_2 = arith.constant 0 : index
    %c0_3 = arith.constant 0 : index
    %4 = vector.load %arg4[%c0_2, %c0_3] : memref<32x256xbf16, #tpu.memory_space<vmem>>, vector<32x256xbf16>
    %cst = arith.constant dense<0.000000e+00> : vector<8x256xf32>
    %5 = tpu.matmul %3, %4, %cst {dimension_numbers = #tpu.dot_dimension_numbers<[1], [0], [0], [1], [0, 0, 1, 1], [], []>} : vector<8x32xbf16>, vector<32x256xbf16>, vector<8x256xf32> -> vector<8x256xf32>
    %cst_4 = arith.constant 3.200000e+01 : f32
    %6 = vector.broadcast %cst_4 : f32 to vector<8x256xf32>
    %7 = arith.mulf %5, %6 : vector<8x256xf32>
    %c1_i32 = arith.constant 1 : i32
    %8 = arith.muli %arg1, %c1_i32 : i32
    %9 = arith.addi %8, %arg2 : i32
    %c256_i32 = arith.constant 256 : i32
    %10 = arith.muli %9, %c256_i32 : i32
    %11 = tpu.iota {dimensions = array<i32: 1>} : vector<1x256xi32>
    %12 = vector.broadcast %10 : i32 to vector<1x256xi32>
    %13 = arith.addi %12, %11 : vector<1x256xi32>
    %c182_i32 = arith.constant 182 : i32
    %14 = vector.broadcast %c182_i32 : i32 to vector<1x256xi32>
    %15 = arith.cmpi slt, %13, %14 : vector<1x256xi32>
    %c0_5 = arith.constant 0 : index
    %c0_6 = arith.constant 0 : index
    %16 = vector.load %arg7[%c0_5, %c0_6] : memref<8x1xf32, #tpu.memory_space<vmem>>, vector<8x1xf32>
    %cst_7 = arith.constant -1.000000e+30 : f32
    %17 = vector.shape_cast %15 : vector<1x256xi1> to vector<1x256xi1>
    %18 = vector.broadcast %17 : vector<1x256xi1> to vector<8x256xi1>
    %19 = vector.broadcast %cst_7 : f32 to vector<8x256xf32>
    %20 = arith.select %18, %7, %19 : vector<8x256xi1>, vector<8x256xf32>
    %cst_8 = arith.constant dense<0xFF800000> : vector<8xf32>
    %21 = vector.multi_reduction <maximumf>, %20, %cst_8 [1] : vector<8x256xf32> to vector<8xf32>
    %22 = vector.shape_cast %21 : vector<8xf32> to vector<8x1xf32>
    %23 = arith.maximumf %16, %22 : vector<8x1xf32>
    %24 = arith.subf %16, %23 : vector<8x1xf32>
    %25 = math.exp %24 : vector<8x1xf32>
    %26 = vector.broadcast %23 : vector<8x1xf32> to vector<8x256xf32>
    %27 = arith.subf %7, %26 : vector<8x256xf32>
    %28 = math.exp %27 : vector<8x256xf32>
    %cst_9 = arith.constant 0.000000e+00 : f32
    %29 = vector.shape_cast %15 : vector<1x256xi1> to vector<1x256xi1>
    %30 = vector.broadcast %29 : vector<1x256xi1> to vector<8x256xi1>
    %31 = vector.broadcast %cst_9 : f32 to vector<8x256xf32>
    %32 = arith.select %30, %28, %31 : vector<8x256xi1>, vector<8x256xf32>
    %33 = vector.extract_strided_slice %32 {offsets = [0, 0], sizes = [8, 128], strides = [1, 1]} : vector<8x256xf32> to vector<8x128xf32>
    %34 = vector.extract_strided_slice %32 {offsets = [0, 128], sizes = [8, 128], strides = [1, 1]} : vector<8x256xf32> to vector<8x128xf32>
    %35 = arith.addf %33, %34 : vector<8x128xf32>
    %c0_10 = arith.constant 0 : index
    %c0_11 = arith.constant 0 : index
    %36 = vector.load %arg8[%c0_10, %c0_11] : memref<8x128xf32, #tpu.memory_space<vmem>>, vector<8x128xf32>
    %37 = vector.broadcast %25 : vector<8x1xf32> to vector<8x128xf32>
    %38 = arith.mulf %37, %36 : vector<8x128xf32>
    %39 = arith.addf %38, %35 : vector<8x128xf32>
    %c0_12 = arith.constant 0 : index
    %c0_13 = arith.constant 0 : index
    %40 = vector.load %arg8[%c0_12, %c0_13] : memref<8x128xf32, #tpu.memory_space<vmem>>, vector<8x128xf32>
    tpu.vector_store %arg8[%c0_12, %c0_13], %39 {strides = array<i32>} : memref<8x128xf32, #tpu.memory_space<vmem>>, vector<8x128xf32>,
    %c0_14 = arith.constant 0 : index
    %c0_15 = arith.constant 0 : index
    %41 = vector.load %arg7[%c0_14, %c0_15] : memref<8x1xf32, #tpu.memory_space<vmem>>, vector<8x1xf32>
    tpu.vector_store %arg7[%c0_14, %c0_15], %23 {strides = array<i32>} : memref<8x1xf32, #tpu.memory_space<vmem>>, vector<8x1xf32>,
    %c0_i32_16 = arith.constant 0 : i32
    %42 = arith.cmpi eq, %arg2, %c0_i32_16 : i32
    %43 = arith.extui %42 : i1 to i32
    %c0_i32_17 = arith.constant 0 : i32
    %44 = arith.cmpi ne, %43, %c0_i32_17 : i32
    scf.if %44 {
      %c0_18 = arith.constant 0 : index
      %c0_19 = arith.constant 0 : index
      %45 = vector.load %arg7[%c0_18, %c0_19] : memref<8x1xf32, #tpu.memory_space<vmem>>, vector<8x1xf32>
      %46 = vector.shape_cast %45 : vector<8x1xf32> to vector<1x8x1xf32>
      %c0_20 = arith.constant 0 : index
      %c0_21 = arith.constant 0 : index
      %c0_22 = arith.constant 0 : index
      %47 = vector.load %arg5[%c0_20, %c0_21, %c0_22] : memref<1x8x1xf32, #tpu.memory_space<vmem>>, vector<1x8x1xf32>
      tpu.vector_store %arg5[%c0_20, %c0_21, %c0_22], %46 {strides = array<i32>} : memref<1x8x1xf32, #tpu.memory_space<vmem>>, vector<1x8x1xf32>,
      %c0_23 = arith.constant 0 : index
      %c0_24 = arith.constant 0 : index
      %48 = vector.load %arg8[%c0_23, %c0_24] : memref<8x128xf32, #tpu.memory_space<vmem>>, vector<8x128xf32>
      %cst_25 = arith.constant dense<0.000000e+00> : vector<8xf32>
      %49 = vector.multi_reduction <add>, %48, %cst_25 [1] : vector<8x128xf32> to vector<8xf32>
      %50 = vector.shape_cast %49 : vector<8xf32> to vector<8x1xf32>
      %51 = vector.shape_cast %50 : vector<8x1xf32> to vector<1x8x1xf32>
      %c0_26 = arith.constant 0 : index
      %c0_27 = arith.constant 0 : index
      %c0_28 = arith.constant 0 : index
      %52 = vector.load %arg6[%c0_26, %c0_27, %c0_28] : memref<1x8x1xf32, #tpu.memory_space<vmem>>, vector<1x8x1xf32>
      tpu.vector_store %arg6[%c0_26, %c0_27, %c0_28], %51 {strides = array<i32>} : memref<1x8x1xf32, #tpu.memory_space<vmem>>, vector<1x8x1xf32>,
    } else {
    }
    return
  }
  func.func @transform_0(%arg0: i32, %arg1: i32, %arg2: i32) -> (i32, i32) {
    %c0_i32 = arith.constant 0 : i32
    %c0_i32_0 = arith.constant 0 : i32
    return %arg0, %c0_i32 : i32, i32
  }
  func.func @transform_1(%arg0: i32, %arg1: i32, %arg2: i32) -> (i32, i32) {
    %c1_i32 = arith.constant 1 : i32
    %0 = arith.muli %arg1, %c1_i32 : i32
    %1 = arith.addi %0, %arg2 : i32
    %c0_i32 = arith.constant 0 : i32
    %c0_i32_0 = arith.constant 0 : i32
    return %c0_i32, %1 : i32, i32
  }
  func.func @transform_2(%arg0: i32, %arg1: i32, %arg2: i32) -> (i32, i32, i32) {
    %c0_i32 = arith.constant 0 : i32
    %c0_i32_0 = arith.constant 0 : i32
    return %arg1, %arg0, %c0_i32 : i32, i32, i32
  }
  func.func @transform_3(%arg0: i32, %arg1: i32, %arg2: i32) -> (i32, i32, i32) {
    %c0_i32 = arith.constant 0 : i32
    %c0_i32_0 = arith.constant 0 : i32
    return %arg1, %arg0, %c0_i32 : i32, i32, i32
  }
}

</mosaic_0001>

<llo_original>
// kernel: mul.18
$region0: #{mul.18}
  #allocation0 [shape = 's32[1]{0}', space=sflag, size = 0x4, scoped, tag = 'scoped memory for mul.18']
  %s0 = inlined_call_operand.vmem [shape: f32[2,182], index: 0, kind: input, shape index: {}, may-alias: {0,1}]
  %s1 = inlined_call_operand.vmem [shape: f32[2,182], index: 1, kind: input, shape index: {}, may-alias: {0,1}]
  %s2 = inlined_call_operand.vmem [shape: f32[2,182], index: 2, kind: output, shape index: {}]
  %v3 = vld [vmem:[%s0] sm:$0x3]
  %v4 = vld [vmem:[%s1] sm:$0x3]
  %5 = xla_tuple %v3, %v4
  %6 = xla_tuple %5
  %v7 = vmul.f32 %v3, %v4
  %8 = xla_tuple %v7
  %9 = vst [vmem:[%s2] sm:$0x3] %v7
  %s10 = scalar_lea.vmem %s0, 2
  %v11 = vld [vmem:[%s10] sm:$0x3]
  %s12 = scalar_lea.vmem %s1, 2
  %v13 = vld [vmem:[%s12] sm:$0x3]
  %14 = xla_tuple %v11, %v13
  %15 = xla_tuple %14
  %v16 = vmul.f32 %v11, %v13
  %17 = xla_tuple %v16
  %s18 = scalar_lea.vmem %s2, 2
  %19 = vst [vmem:[%s18] sm:$0x3] %v16

// kernel: _elastic_arcface_forward.1
$region0: #{_elastic_arcface_forward.1}
  #allocation0 [shape = 'u32[]', space=smem, size = 0x4, offset = 0x4, fixed_abs, tag = 'smem constant byte address 0x4 - core index']
  #allocation1 [shape = 'u32[144,128]{1,0:T(1,128)}', space=vmem, size = 0x12000, scoped, tag = 'internal scratch']
  #allocation2 [shape = 'f32[8,1]{1,0:T(8,128)}', space=vmem, size = 0x1000, scoped, tag = 'scratch operand']
  #allocation3 [shape = 'f32[8,128]{1,0:T(8,128)}', space=vmem, size = 0x1000, scoped, tag = 'scratch operand']
  %s0 = inlined_call_operand.vmem [shape: bf16[8,32], index: 0, kind: input, shape index: {}]
  %s1 = inlined_call_operand.vmem [shape: bf16[32,256], index: 1, kind: input, shape index: {}]
  %s2 = inlined_call_operand.vmem [shape: f32[1,8,1], index: 2, kind: output, shape index: {0}]
  %s3 = inlined_call_operand.vmem [shape: f32[1,8,1], index: 3, kind: output, shape index: {1}]
  %4 = xla_tuple %s2, %s3
  %s5 = sld [smem:[#allocation0]]
  $region34: #{_elastic_arcface_forward.1} parent=0
    _
  %s7 = ssub.s32 1, %s5
  %s8 = scalar_select 0, %s7, %s5
  // Predicated region
  $region2: #{_elastic_arcface_forward.1} parent=0 // pred_check
    _
  $region3: #{_elastic_arcface_forward.1} parent=0 // pred_check_branch
    %10 = sbr.rel (0) target = $region5
  $region4: #{_elastic_arcface_forward.1} parent=0 // pred_region
    _
  $region5: #{_elastic_arcface_forward.1} parent=0 // pred_fallthru
    _
  // Predicated region
  $region6: #{_elastic_arcface_forward.1} parent=0 // pred_check
    _
  $region7: #{_elastic_arcface_forward.1} parent=0 // pred_check_branch
    %12 = sbr.rel (0) target = $region9
  $region8: #{_elastic_arcface_forward.1} parent=0 // pred_region
    %s13 = sadd.s32 0, 0
    %s14 = smul.u32 2, %s13
    %p15 = scmp.lt.s32.totalorder %s14, 1
    %s16 = scalar_select %p15, %s14, 1
    %s17 = smul.addr %s16, 4
    %s18 = scalar_lea.vmem %s1, %s17
    %s19 = sadd.s32 0, 0
    %s20 = smul.u32 2, %s19
  $region9: #{_elastic_arcface_forward.1} parent=0 // pred_fallthru
    _
  %s21 = sadd.s32 0, 0
  %s22 = smul.u32 2, %s21
  %p23 = scmp.lt.s32.totalorder %s22, 1
  %s24 = scalar_select %p23, %s22, 1
  %s25 = smul.addr %s24, 4
  %s26 = scalar_lea.vmem %s1, %s25
  %s27 = sadd.s32 0, 0
  %s28 = smul.u32 2, %s27
  %p29 = scmp.lt.s32.totalorder %s28, 1
  %s30 = scalar_select %p29, %s28, 1
  %s31 = smul.addr %s30, 4
  %s32 = scalar_lea.vmem %s1, %s31
  %s33 = sadd.s32 0, 0
  %s34 = smul.u32 2, %s33
  %p36 = scmp.eq.s32.totalorder 0, 0
  // Predicated region
  $region10: #{_elastic_arcface_forward.1} parent=0 // pred_check
    %p37 = pneg %p36
  $region11: #{_elastic_arcface_forward.1} parent=0 // pred_check_branch
    %39 = sbr.rel (%p37) target = $region13
  $region12: #{_elastic_arcface_forward.1} parent=0 // pred_region
    %vm40 = vcmask 7168
    %41 = vst.msk [vmem:[#allocation2] sm:$0xff] %vm40, -1e+30
    %42 = vst [vmem:[#allocation3] sm:$0xff] 0.0
  $region13: #{_elastic_arcface_forward.1} parent=0 // pred_fallthru
    _
  %v43 = vld [vmem:[%s0] sm:$0xf]
  %v44 = vld [vmem:[%s32] sm:$0xff]
  %v45 = vld [vmem:[%s32 + $0x8] sm:$0xff]
  %v46 = vld [vmem:[%s32 + $0x10] sm:$0xff]
  %v47 = vld [vmem:[%s32 + $0x18] sm:$0xff]
  %v52 = vunpack.c.l.b16 %v44
  %v53 = vunpack.c.h.b16 %v44
  %v54 = vunpack.c.l.b16 %v45
  %v55 = vunpack.c.h.b16 %v45
  %v56 = vunpack.c.l.b16 %v46
  %v57 = vunpack.c.h.b16 %v46
  %v58 = vunpack.c.l.b16 %v47
  %v59 = vunpack.c.h.b16 %v47
  %v60 = vpack.c.b16 %v54, %v52
  %v61 = vpack.c.b16 %v55, %v53
  %v62 = vpack.c.b16 %v58, %v56
  %v63 = vpack.c.b16 %v59, %v57
  %vm68 = vcmask 261120
  %v70 = vsel %vm68, %v43, 0
  %72 = vmatprep.subr.bf16.mxu0 0
  %73 = vmatpush1.bf16.msra.mxu0 0
  %74 = vmatprep.subr.bf16.mxu0 0
  %75 = vmatpush1.bf16.msra.mxu0 0
  %76 = vmatprep.subr.bf16.mxu0 0
  %77 = vmatpush1.bf16.msra.mxu0 0
  %78 = vmatprep.subr.bf16.mxu0 0
  %79 = vmatpush1.bf16.msra.mxu0 0
  %80 = vmatprep.subr.bf16.mxu0 0
  %81 = vmatpush1.bf16.msra.mxu0 0
  %82 = vmatprep.subr.bf16.mxu0 0
  %83 = vmatpush1.bf16.msra.mxu0 0
  %84 = vmatprep.subr.bf16.mxu0 %v63
  %85 = vmatpush1.bf16.msra.mxu0 %v62
  %86 = vmatprep.subr.bf16.mxu0 %v61
  %87 = vmatpush1.bf16.msra.mxu0 %v60
  %88 = vmatprep.subr.bf16.mxu0 0
  %89 = vmatpush2.bf16.msra.mxu0 0
  %90 = vmatprep.subr.bf16.mxu0 0
  %91 = vmatpush2.bf16.msra.mxu0 0
  %92 = vmatprep.subr.bf16.mxu0 0
  %93 = vmatpush2.bf16.msra.mxu0 0
  %94 = vmatprep.subr.bf16.mxu0 0
  %95 = vmatpush2.bf16.msra.mxu0 0
  %96 = vmatprep.subr.bf16.mxu0 0
  %97 = vmatpush2.bf16.msra.mxu0 0
  %98 = vmatprep.subr.bf16.mxu0 0
  %99 = vmatpush2.bf16.msra.mxu0 0
  %100 = vmatprep.subr.bf16.mxu0 0
  %101 = vmatpush2.bf16.msra.mxu0 0
  %102 = vmatprep.subr.bf16.mxu0 0
  %103 = vmatpush2.bf16.msra.mxu0 0
  %104 = vmatprep.mubr.bf16.mxu0 0
  %105 = vmatmul.mubr.bf16.gmra.mxu0 %v70
  %v106 = vpop.f32.mrf.mxu0
  %v107 = vadd.f32 0.0, %v106
  %v108 = vpop.f32.mrf.mxu0
  %v109 = vadd.f32 0.0, %v108
  %v110 = vpop.f32.mrf.mxu0
  %v111 = vpop.f32.mrf.mxu0
  %112 = vdwg.mxu0
  %v113 = vmul.f32 %v107, 32.0
  %v114 = vmul.f32 %v109, 32.0
  %s115 = sadd.s32 0, 0
  %s116 = smul.u32 %s115, 256
  %v117 = vlaneseq
  %v118 = vand.u32 %v117, 127
  %v119 = vadd.s32 %v118, 128
  %v120 = vstv %s116
  %v121 = vadd.s32 %v120, %v118
  %v122 = vadd.s32 %v120, %v119
  %vm123 = vcmp.lt.s32.totalorder %v121, 182
  %vm124 = vcmp.lt.s32.totalorder %v122, 182
  %v125 = vld [vmem:[#allocation2] sm:$0xff]
  %v126 = vsel %vm123, 1, 0
  %v127 = vsel %vm124, 1, 0
  %vm128 = vcmp.eq.s32.totalorder %v126, 1
  %vm129 = vcmp.eq.s32.totalorder %v127, 1
  %v130 = vsel %vm128, %v113, -1e+30
  %v131 = vsel %vm129, %v114, -1e+30
  %v132 = vmax.f32 %v130, %v131
  %133 = vmax.xlane.f32.xlu0 %v132
  %v134 = vpop.xlane.xlu0 %133
  %v135 = vmax.f32 %v125, %v134
  %v136 = vsub.f32 %v125, %v135
  %v137 = vmul.f32 %v136, 1.442695
  %v138 = vpow.pop %v137
  %140 = vset.pattern.permute.xlu0 0
  %141 = vperm.xlu0 %140, %v135
  %v142 = vpop.permute.xlu0 %141
  %v144 = vsub.f32 %v113, %v142
  %v145 = vsub.f32 %v114, %v142
  %v146 = vmul.f32 %v144, 1.442695
  %v147 = vpow.pop %v146
  %v148 = vmul.f32 %v145, 1.442695
  %v149 = vpow.pop %v148
  %v150 = vsel %vm128, %v147, 0.0
  %v151 = vsel %vm129, %v149, 0.0
  %v152 = vadd.f32 %v150, %v151
  %v153 = vld [vmem:[#allocation3] sm:$0xff]
  %155 = vset.pattern.permute.xlu0 0
  %156 = vperm.xlu0 %155, %v138
  %v157 = vpop.permute.xlu0 %156
  %v159 = vmul.f32 %v157, %v153
  %v160 = vadd.f32 %v159, %v152
  %161 = vst [vmem:[#allocation3] sm:$0xff] %v160
  %vm162 = vcmask 7168
  %163 = vst.msk [vmem:[#allocation2] sm:$0xff] %vm162, %v135
  // Predicated region
  $region14: #{_elastic_arcface_forward.1} parent=0 // pred_check
    %p164 = pneg %p36
  $region15: #{_elastic_arcface_forward.1} parent=0 // pred_check_branch
    %166 = sbr.rel (%p164) target = $region17
  $region16: #{_elastic_arcface_forward.1} parent=0 // pred_region
    %v167 = vld [vmem:[#allocation2] sm:$0xff]
    %168 = vst.msk [vmem:[%s2] sm:$0xff] %vm162, %v167
    %v169 = vld [vmem:[#allocation3] sm:$0xff]
    %170 = vadd.xlane.f32.xlu0 %v169
    %v171 = vpop.xlane.xlu0 %170
    %172 = vst.msk [vmem:[%s3] sm:$0xff] %vm162, %v171
  $region17: #{_elastic_arcface_forward.1} parent=0 // pred_fallthru
    _
  // Predicated region
  $region18: #{_elastic_arcface_forward.1} parent=0 // pred_check
    _
  $region19: #{_elastic_arcface_forward.1} parent=0 // pred_check_branch
    %174 = sbr.rel (0) target = $region21
  $region20: #{_elastic_arcface_forward.1} parent=0 // pred_region
    _
  $region21: #{_elastic_arcface_forward.1} parent=0 // pred_fallthru
    _
  // Predicated region
  $region22: #{_elastic_arcface_forward.1} parent=0 // pred_check
    _
  $region23: #{_elastic_arcface_forward.1} parent=0 // pred_check_branch
    %176 = sbr.rel (0) target = $region25
  $region24: #{_elastic_arcface_forward.1} parent=0 // pred_region
    _
  $region25: #{_elastic_arcface_forward.1} parent=0 // pred_fallthru
    _
  // Predicated region
  $region26: #{_elastic_arcface_forward.1} parent=0 // pred_check
    _
  $region27: #{_elastic_arcface_forward.1} parent=0 // pred_check_branch
    %178 = sbr.rel (0) target = $region29
  $region28: #{_elastic_arcface_forward.1} parent=0 // pred_region
    _
  $region29: #{_elastic_arcface_forward.1} parent=0 // pred_fallthru
    _
  // Predicated region
  $region30: #{_elastic_arcface_forward.1} parent=0 // pred_check
    _
  $region31: #{_elastic_arcface_forward.1} parent=0 // pred_check_branch
    %180 = sbr.rel (0) target = $region33
  $region32: #{_elastic_arcface_forward.1} parent=0 // pred_region
    _
  $region33: #{_elastic_arcface_forward.1} parent=0 // pred_fallthru
    _

</llo_original>
